<compile_context>
chip_gen: v5e
topology: v5e:2x2
jax: 0.10.0
libtpu: 0.0.40
codegen_flags: <defaults>
</compile_context>

<pallas_src>
import functools

import jax
import jax.numpy as jnp
from jax import lax
from jax.experimental import pallas as pl
from jax.experimental.pallas import tpu as pltpu


def _round_up(x, m):
    return (x + m - 1) // m * m


def _pick_tm(mp):
    """Largest M tile <= 512 that avoids M padding when possible."""
    if mp <= 512:
        return mp
    for t in (512, 384, 256, 128):
        if mp % t == 0:
            return t
    return 512


def _patch_gemm_kernel(a_ref, w_ref, bias_ref, o_ref):
    """One (tm, N) output tile: full-K matmul + fused bias epilogue."""
    # a_ref: (tm, K) bf16, w_ref: (N, K) bf16 -> contract on last dims (no .T).
    acc = lax.dot_general(
        a_ref[...], w_ref[...],
        dimension_numbers=(((1,), (1,)), ((), ())),
        preferred_element_type=jnp.float32)
    o_ref[...] = (acc + bias_ref[...]).astype(o_ref.dtype)


def _patch_gemm(a, w, bias, out_dtype):
    """out = a @ w.T + bias.

    a: (M, K) activations (patch rows), w: (N, K) flattened Conv2d weight,
    bias: (N,).  Single K step, single lane-dense N tile, M tiled & parallel.
    """
    M, K = a.shape
    N, K2 = w.shape
    assert K == K2 and bias.shape == (N,)

    mp = _round_up(M, 8)
    tm = _pick_tm(mp)
    mpad = _round_up(mp, tm)

    a_bf = a.astype(jnp.bfloat16)
    if mpad != M:
        a_bf = jnp.pad(a_bf, ((0, mpad - M), (0, 0)))
    w_bf = w.astype(jnp.bfloat16)
    bias2d = bias.astype(jnp.float32).reshape(1, N)

    grid = (mpad // tm,)
    out = pl.pallas_call(
        _patch_gemm_kernel,
        out_shape=jax.ShapeDtypeStruct((mpad, N), out_dtype),
        grid_spec=pltpu.PrefetchScalarGridSpec(
            num_scalar_prefetch=0,
            grid=grid,
            in_specs=[
                pl.BlockSpec((tm, K), lambda i: (i, 0)),   # A tile, streamed once
                pl.BlockSpec((N, K), lambda i: (0, 0)),    # full weight, resident
                pl.BlockSpec((1, N), lambda i: (0, 0)),    # bias, resident
            ],
            out_specs=pl.BlockSpec((tm, N), lambda i: (i, 0)),
        ),
        compiler_params=pltpu.CompilerParams(
            dimension_semantics=("parallel",),
            vmem_limit_bytes=48 * 1024 * 1024,
        ),
    )(a_bf, w_bf, bias2d)

    if mpad != M:
        out = out[:M, :]
    return out


@functools.partial(jax.jit, static_argnames=("patch_size",))
def patch_embed_forward(x, weight, bias, *, patch_size):
    """PatchEmbed.forward: Conv2d(k=ps, stride=ps) -> flatten(2).transpose(1,2).

    x:      (B, C, H, W)
    weight: (embed_dim, C, ps, ps)   (PyTorch Conv2d layout)
    bias:   (embed_dim,)
    returns (B, num_patches, embed_dim)
    """
    B, C, H, W = x.shape
    ps = patch_size
    assert H % ps == 0 and W % ps == 0
    gh, gw = H // ps, W // ps
    num_patches = gh * gw
    embed_dim = weight.shape[0]

    # TODO(synk): fold this NCHW patch-extraction transpose into the kernel's
    # A-side DMA (index_map / manual gather) to skip one full HBM pass.
    patches = x.reshape(B, C, gh, ps, gw, ps).transpose(0, 2, 4, 1, 3, 5)
    patches = patches.reshape(B * num_patches, C * ps * ps)

    # Free reshape of the Conv2d weight; kernel contracts on its last dim,
    # so no HBM transpose pass is emitted.
    w2d = weight.reshape(embed_dim, C * ps * ps)

    out = _patch_gemm(patches, w2d, bias, x.dtype)
    return out.reshape(B, num_patches, embed_dim)


if __name__ == "__main__":
    key = jax.random.PRNGKey(0)
    B, C, H, W = 2, 4, 16, 16
    ps, embed_dim = 4, 32

    k1, k2, k3 = jax.random.split(key, 3)
    x = jax.random.normal(k1, (B, C, H, W), jnp.float32)
    weight = jax.random.normal(k2, (embed_dim, C, ps, ps), jnp.float32) * 0.02
    bias = jax.random.normal(k3, (embed_dim,), jnp.float32) * 0.02

    out = patch_embed_forward(x, weight, bias, patch_size=ps)
    out = jax.block_until_ready(out)

    # Pure-JAX reference (same semantics as nn.Conv2d + flatten + transpose).
    ref = jax.lax.conv_general_dilated(
        x, weight, window_strides=(ps, ps), padding="VALID",
        dimension_numbers=("NCHW", "OIHW", "NCHW"),
        precision=jax.lax.Precision.HIGHEST)
    ref = ref + bias[None, :, None, None]
    ref = ref.reshape(B, embed_dim, (H // ps) * (W // ps)).transpose(0, 2, 1)

    assert out.shape == (B, (H // ps) * (W // ps), embed_dim), out.shape
    # bf16 MXU operands: slightly looser than f32, but tiny at K = C*ps*ps.
    max_err = float(jnp.max(jnp.abs(out - ref)))
    assert max_err < 5e-2, f"max abs err {max_err}"
    print("KERNEL_OK")
</pallas_src>

<mosaic_0001>
module attributes {stable_mosaic.version = 11 : i64} {
  func.func @_patch_gemm_kernel(%arg0: i32, %arg1: memref<32x64xbf16, #tpu.memory_space<vmem>>, %arg2: memref<32x64xbf16, #tpu.memory_space<vmem>>, %arg3: memref<1x32xf32, #tpu.memory_space<vmem>>, %arg4: memref<32x32xf32, #tpu.memory_space<vmem>>) attributes {dimension_semantics = [#tpu.dimension_semantics<parallel>], iteration_bounds = array<i64: 1>, scalar_prefetch = 0 : i64, scratch_operands = 0 : i64, tpu.core_type = #tpu.core_type<tc>, window_params = [{transform_indices = @transform_0, window_bounds = array<i64: 32, 64>}, {pipeline_mode = #tpu.pipeline_mode<synchronous>, transform_indices = @transform_1, window_bounds = array<i64: 32, 64>}, {pipeline_mode = #tpu.pipeline_mode<synchronous>, transform_indices = @transform_2, window_bounds = array<i64: 1, 32>}, {transform_indices = @transform_3, window_bounds = array<i64: 32, 32>}]} {
    %c0 = arith.constant 0 : index
    %c0_0 = arith.constant 0 : index
    %0 = vector.load %arg1[%c0, %c0_0] : memref<32x64xbf16, #tpu.memory_space<vmem>>, vector<32x64xbf16>
    %c0_1 = arith.constant 0 : index
    %c0_2 = arith.constant 0 : index
    %1 = vector.load %arg2[%c0_1, %c0_2] : memref<32x64xbf16, #tpu.memory_space<vmem>>, vector<32x64xbf16>
    %cst = arith.constant dense<0.000000e+00> : vector<32x32xf32>
    %2 = tpu.matmul %0, %1, %cst {dimension_numbers = #tpu.dot_dimension_numbers<[1], [1], [0], [0], [0, 0, 1, 0], [], []>} : vector<32x64xbf16>, vector<32x64xbf16>, vector<32x32xf32> -> vector<32x32xf32>
    %c0_3 = arith.constant 0 : index
    %c0_4 = arith.constant 0 : index
    %3 = vector.load %arg3[%c0_3, %c0_4] : memref<1x32xf32, #tpu.memory_space<vmem>>, vector<1x32xf32>
    %4 = vector.broadcast %3 : vector<1x32xf32> to vector<32x32xf32>
    %5 = arith.addf %2, %4 : vector<32x32xf32>
    %c0_5 = arith.constant 0 : index
    %c0_6 = arith.constant 0 : index
    %6 = vector.load %arg4[%c0_5, %c0_6] : memref<32x32xf32, #tpu.memory_space<vmem>>, vector<32x32xf32>
    tpu.vector_store %arg4[%c0_5, %c0_6], %5 {strides = array<i32>} : memref<32x32xf32, #tpu.memory_space<vmem>>, vector<32x32xf32>,
    return
  }
  func.func @transform_0(%arg0: i32) -> (i32, i32) {
    %c0_i32 = arith.constant 0 : i32
    %c0_i32_0 = arith.constant 0 : i32
    return %arg0, %c0_i32 : i32, i32
  }
  func.func @transform_1(%arg0: i32) -> (i32, i32) {
    %c0_i32 = arith.constant 0 : i32
    %c0_i32_0 = arith.constant 0 : i32
    %c0_i32_1 = arith.constant 0 : i32
    return %c0_i32, %c0_i32_0 : i32, i32
  }
  func.func @transform_2(%arg0: i32) -> (i32, i32) {
    %c0_i32 = arith.constant 0 : i32
    %c0_i32_0 = arith.constant 0 : i32
    %c0_i32_1 = arith.constant 0 : i32
    return %c0_i32, %c0_i32_0 : i32, i32
  }
  func.func @transform_3(%arg0: i32) -> (i32, i32) {
    %c0_i32 = arith.constant 0 : i32
    %c0_i32_0 = arith.constant 0 : i32
    return %arg0, %c0_i32 : i32, i32
  }
}

</mosaic_0001>

<llo_original>
// kernel: patch_embed_forward.1
$region0: #{patch_embed_forward.1}
  #allocation0 [shape = 'u32[]', space=smem, size = 0x4, offset = 0x4, fixed_abs, tag = 'smem constant byte address 0x4 - core index']
  #allocation1 [shape = 'u32[72,128]{1,0:T(1,128)}', space=vmem, size = 0x9000, scoped, tag = 'internal scratch']
  %s0 = inlined_call_operand.vmem [shape: bf16[32,64], index: 0, kind: input, shape index: {}]
  %s1 = inlined_call_operand.vmem [shape: bf16[32,64], index: 1, kind: input, shape index: {}]
  %s2 = inlined_call_operand.vmem [shape: f32[1,32], index: 2, kind: input, shape index: {}]
  %s3 = inlined_call_operand.hbm [shape: f32[32,32], index: 3, kind: output, shape index: {}]
  %s4 = sld [smem:[#allocation0]]
  $region22: #{patch_embed_forward.1} parent=0
    _
  %s6 = ssub.s32 1, %s4
  %s7 = scalar_select 0, %s6, %s4
  $region1: #{patch_embed_forward.1} parent=0
    #allocation2 [shape = 'u8[16384]{0}', space=vmem, size = 0x4000, scoped, tag = 'output window, operand 0, single buffered']
    #allocation3 [shape = 's32[1]{0}', space=sflag, size = 0x4, scoped, tag = 'scoped memory for patch_embed_forward.1']
    %8 = vsyncpa [#allocation3], 0
    // Predicated region
    $region2: #{patch_embed_forward.1} parent=1 // pred_check
      _
    $region3: #{patch_embed_forward.1} parent=1 // pred_check_branch
      %10 = sbr.rel (0) target = $region5
    $region4: #{patch_embed_forward.1} parent=1 // pred_region
      _
    $region5: #{patch_embed_forward.1} parent=1 // pred_fallthru
      _
    // Predicated region
    $region6: #{patch_embed_forward.1} parent=1 // pred_check
      _
    $region7: #{patch_embed_forward.1} parent=1 // pred_check_branch
      %12 = sbr.rel (0) target = $region9
    $region8: #{patch_embed_forward.1} parent=1 // pred_region
      _
    $region9: #{patch_embed_forward.1} parent=1 // pred_fallthru
      _
    // Predicated region
    $region10: #{patch_embed_forward.1} parent=1 // pred_check
      _
    $region11: #{patch_embed_forward.1} parent=1 // pred_check_branch
      %14 = sbr.rel (0) target = $region13
    $region12: #{patch_embed_forward.1} parent=1 // pred_region
      _
    $region13: #{patch_embed_forward.1} parent=1 // pred_fallthru
      _
    %v16 = vld [vmem:[%s0] sm:$0xf]
    %v17 = vld [vmem:[%s0 + $0x4] sm:$0xf]
    %v18 = vld [vmem:[%s0 + $0x8] sm:$0xf]
    %v19 = vld [vmem:[%s0 + $0xc] sm:$0xf]
    %v20 = vld [vmem:[%s1] sm:$0xf]
    %v21 = vld [vmem:[%s1 + $0x4] sm:$0xf]
    %v22 = vld [vmem:[%s1 + $0x8] sm:$0xf]
    %v23 = vld [vmem:[%s1 + $0xc] sm:$0xf]
    %v24 = vld [vmem:[%s2] sm:$0x1]
    %v26 = vperm.slane %v24, 0
    %v32 = vunpack.c.l.b16 %v16
    %v33 = vunpack.c.l.b16 %v17
    %v34 = vunpack.c.l.b16 %v18
    %v35 = vunpack.c.l.b16 %v19
    %v36 = vpack.c.b16 %v33, %v32
    %v37 = vpack.c.b16 %v35, %v34
    %v42 = vunpack.c.l.b16 %v20
    %v43 = vunpack.c.l.b16 %v21
    %v44 = vunpack.c.l.b16 %v22
    %v45 = vunpack.c.l.b16 %v23
    %v46 = vpack.c.b16 %v43, %v42
    %v47 = vpack.c.b16 %v45, %v44
    %vm48 = vcmask 523264
    %v50 = vsel %vm48, %v36, 0
    %v53 = vsel %vm48, %v37, 0
    %v56 = vsel %vm48, %v46, 0
    %v59 = vsel %vm48, %v47, 0
    %61 = vmatpush.bf16.xpose.msra.mxu0 0
    %62 = vmatpush.bf16.xpose.msra.mxu0 0
    %63 = vmatpush.bf16.xpose.msra.mxu0 0
    %64 = vmatpush.bf16.xpose.msra.mxu0 0
    %65 = vmatpush.bf16.xpose.msra.mxu0 0
    %66 = vmatpush.bf16.xpose.msra.mxu0 0
    %67 = vmatpush.bf16.xpose.msra.mxu0 %v59
    %68 = vmatpush.bf16.xpose.msra.mxu0 %v56
    %69 = vmatmul.bf16.gmra.mxu0 %v50
    %v70 = vpop.f32.mrf.mxu0
    %v71 = vadd.f32 %v26, %v70
    %v72 = vpop.f32.mrf.mxu0
    %v73 = vadd.f32 %v26, %v72
    %74 = vmatmul.bf16.gmra.mxu0 %v53
    %v75 = vpop.f32.mrf.mxu0
    %v76 = vadd.f32 %v26, %v75
    %v77 = vpop.f32.mrf.mxu0
    %v78 = vadd.f32 %v26, %v77
    %79 = vdwg.mxu0
    %vm80 = vcmask 261120
    %81 = vst.msk [vmem:[#allocation2] sm:$0xff] %vm80, %v71
    %82 = vst.msk [vmem:[#allocation2 + $0x8] sm:$0xff] %vm80, %v73
    %83 = vst.msk [vmem:[#allocation2 + $0x10] sm:$0xff] %vm80, %v76
    %84 = vst.msk [vmem:[#allocation2 + $0x18] sm:$0xff] %vm80, %v78
    // Predicated region
    $region14: #{patch_embed_forward.1} parent=1 // pred_check
      _
    $region15: #{patch_embed_forward.1} parent=1 // pred_check_branch
      %86 = sbr.rel (0) target = $region17
    $region16: #{patch_embed_forward.1} parent=1 // pred_region
      %88 = vsyncadd [#allocation3], 0
      %s89 = sshll.u32 [#allocation2], 4
      %s90 = int_to_ptr.vmem [resolvable:$true] %s89
      %s91 = sshll.u32 %s3, 4
      %s92 = int_to_ptr.hbm [resolvable:$true] %s91
      %97 = dma.vmem_to_hbm [thread:$0]  %s90, 512, %s92, [#allocation3], 128, 128, 8
    $region17: #{patch_embed_forward.1} parent=1 // pred_fallthru
      _
    // Predicated region
    $region18: #{patch_embed_forward.1} parent=1 // pred_check
      _
    $region19: #{patch_embed_forward.1} parent=1 // pred_check_branch
      %99 = sbr.rel (0) target = $region21
    $region20: #{patch_embed_forward.1} parent=1 // pred_region
      %101 = dma.done [#allocation3], 512
    $region21: #{patch_embed_forward.1} parent=1 // pred_fallthru
      _
    %102 = vsyncpa [#allocation3], 1

</llo_original>
